<compile_context>
chip_gen: v6e
topology: v6e:2x2x1
jax: 0.10.0
libtpu: 0.0.40
codegen_flags: <defaults>
</compile_context>

<pallas_src>
import functools

import jax
import jax.numpy as jnp
from jax import lax
from jax.experimental import pallas as pl
from jax.experimental.pallas import tpu as pltpu


def _twin_causal_kernel(xt_ref, xc_ref, treat_ref,
                        w1_ref, b1_ref, scale_ref, w2_ref, b2_ref,
                        m1t_ref, m11_ref, m10_ref,
                        *, lrelu_slope: float, tile: int):
    """One batch tile: fused treated/control branches, lane-dense outputs."""
    # Resident (tiny) parameters, read once per tile.
    w1 = w1_ref[...]          # (D, H)   f32
    b1 = b1_ref[...]          # (1, H)   f32
    scale = scale_ref[...]    # (1, H)   f32  == scaling_a - scaling_b
    w2 = w2_ref[...]          # (1, H)   f32  (fc_output weight as a row)
    b2 = b2_ref[...]          # (1, 1)   f32

    # Fuse the two branches: one (2*tile, D) activation slab -> single matmul.
    xt = xt_ref[...].astype(jnp.float32)      # (T, D)
    xc = xc_ref[...].astype(jnp.float32)      # (T, D)
    x = jnp.concatenate([xt, xc], axis=0)     # (2T, D)

    h = jnp.dot(x, w1, preferred_element_type=jnp.float32) + b1   # (2T, H)
    h = h * scale
    h = jnp.where(h > 0, h, lrelu_slope * h)                      # leaky_relu

    # Output layer (width 1): contract over H with the batch ending up on the
    # lane axis -> lane-dense (1, 2T) result (no masked vst.msk stores).
    o = lax.dot_general(w2, h, (((1,), (1,)), ((), ())),
                        preferred_element_type=jnp.float32)        # (1, 2T)
    m = jax.nn.sigmoid(o + b2)                                     # (1, 2T)

    m11 = m[:, :tile]                       # treated branch  (1, T)
    m10 = m[:, tile:]                       # control branch  (1, T)
    t = treat_ref[0].astype(jnp.float32)    # (1, T) lane-dense

    m11_ref[0] = m11
    m10_ref[0] = m10
    m1t_ref[0] = m11 * t + m10 * (1.0 - t)


def twin_causal_forward(x_treat, x_control, treat,
                        w1, b1, scaling_a, scaling_b, w2, b2,
                        *, lrelu_slope=0.0, batch_tile=1024):
    """Wrapper: pads/tiles the batch dimension; weights resident across the grid."""
    B, D = x_treat.shape
    H = w1.shape[1]
    f32 = jnp.float32

    # --- tile selection ---------------------------------------------------
    # Multiple of 128 (lane-dense outputs / bf16-safe sublane packing), as
    # large as `batch_tile`, and split so large batches expose >= 2 grid steps
    # (keeps both v7x TensorCores busy). VMEM stays far under the 32 MiB
    # scoped default even at batch_tile=4096 with D this small.
    chunks = -(-B // 128)                                  # 128-row chunks
    tile = min(int(batch_tile), 128 * max(1, (chunks + 1) // 2))
    tile = max(128, (tile // 128) * 128)
    num_tiles = -(-B // tile)
    B_pad = num_tiles * tile

    # --- cheap host-side parameter prep (feature-dim only) -----------------
    w1_f = w1.astype(f32)                                  # (D, H)
    b1_f = b1.reshape(1, H).astype(f32)
    scale_f = (scaling_a - scaling_b).reshape(1, H).astype(f32)
    w2_row = w2.reshape(1, H).astype(f32)                  # (H,1) -> (1,H) row
    b2_f = jnp.asarray(b2, f32).reshape(1, 1)

    # Activations are passed at their native dtype (no up-cast in the wrapper);
    # the kernel casts to f32 after the DMA.
    treat_flat = treat.reshape(-1)
    if B_pad != B:
        pad = B_pad - B
        x_treat = jnp.pad(x_treat, ((0, pad), (0, 0)))
        x_control = jnp.pad(x_control, ((0, pad), (0, 0)))
        treat_flat = jnp.pad(treat_flat, (0, pad))
    treat_blk = treat_flat.reshape(num_tiles, 1, tile)     # lane-dense

    grid = (num_tiles,)
    row_spec = pl.BlockSpec((tile, D), lambda i: (i, 0))
    lane_spec = pl.BlockSpec((1, 1, tile), lambda i: (i, 0, 0))
    full_spec = lambda shp: pl.BlockSpec(shp, lambda i: (0, 0))

    out_struct = jax.ShapeDtypeStruct((num_tiles, 1, tile), f32)

    kernel = functools.partial(_twin_causal_kernel,
                               lrelu_slope=float(lrelu_slope), tile=tile)

    m1t, m11, m10 = pl.pallas_call(
        kernel,
        out_shape=(out_struct, out_struct, out_struct),
        grid=grid,
        in_specs=[
            row_spec,                  # x_treat   (B_pad, D)
            row_spec,                  # x_control (B_pad, D)
            lane_spec,                 # treat     (num_tiles, 1, tile)
            full_spec((D, H)),         # W1
            full_spec((1, H)),         # b1
            full_spec((1, H)),         # scaling_a - scaling_b
            full_spec((1, H)),         # W2 as row
            full_spec((1, 1)),         # b2
        ],
        out_specs=(lane_spec, lane_spec, lane_spec),
        compiler_params=pltpu.CompilerParams(
            dimension_semantics=("parallel",)),
    )(x_treat, x_control, treat_blk, w1_f, b1_f, scale_f, w2_row, b2_f)

    def unpack(y):
        return y.reshape(B_pad)[:B].reshape(B, 1)

    return unpack(m1t), unpack(m11), unpack(m10)


def reference_forward(x_treat, x_control, treat, w1, b1, sa, sb, w2, b2, slope):
    def branch(x):
        h = x @ w1 + b1
        h = h * (sa - sb)
        h = jnp.where(h > 0, h, slope * h)
        return jax.nn.sigmoid(h @ w2 + b2)
    m11 = branch(x_treat)
    m10 = branch(x_control)
    return m11 * treat + m10 * (1.0 - treat), m11, m10


if __name__ == "__main__":
    # Small config consistent with the nb_hlayers=1 forward:
    nb_features = 8
    input_size = nb_features + 1          # torch module appends treatment indicator
    nb_neurons = 32
    lrelu_slope = 0.0
    batch = 16

    key = jax.random.PRNGKey(0)
    k = jax.random.split(key, 9)

    # Deterministic synthetic parameters (LinearProximal effective weight = Wu - Wv;
    # here a single effective weight per layer).
    w1 = jax.random.normal(k[0], (input_size, nb_neurons), jnp.float32) * 0.1
    b1 = jax.random.normal(k[1], (nb_neurons,), jnp.float32) * 0.1
    scaling_a = jnp.abs(jax.random.normal(k[2], (nb_neurons,), jnp.float32))
    scaling_b = jnp.abs(jax.random.normal(k[3], (nb_neurons,), jnp.float32))
    w2 = jax.random.normal(k[4], (nb_neurons, 1), jnp.float32) * 0.1
    b2 = jax.random.normal(k[5], (1,), jnp.float32) * 0.1

    # Inputs: x_treat / x_control are (batch, nb_features + 1); treat is (batch, 1)
    x_treat = jax.random.normal(k[6], (batch, input_size), jnp.float32)
    x_control = jax.random.normal(k[7], (batch, input_size), jnp.float32)
    treat = (jax.random.uniform(k[8], (batch, 1)) > 0.5).astype(jnp.float32)

    m1t, m11, m10 = twin_causal_forward(
        x_treat, x_control, treat, w1, b1, scaling_a, scaling_b, w2, b2,
        lrelu_slope=lrelu_slope)
    jax.block_until_ready((m1t, m11, m10))

    # Correctness check against a pure-JAX reference.
    r1t, r11, r10 = reference_forward(
        x_treat, x_control, treat, w1, b1.reshape(1, -1),
        scaling_a.reshape(1, -1), scaling_b.reshape(1, -1), w2, b2.reshape(1, 1),
        lrelu_slope)
    assert m1t.shape == (batch, 1) and m11.shape == (batch, 1) and m10.shape == (batch, 1)
    assert jnp.allclose(m1t, r1t, atol=1e-5)
    assert jnp.allclose(m11, r11, atol=1e-5)
    assert jnp.allclose(m10, r10, atol=1e-5)

    print("KERNEL_OK")
</pallas_src>

<mosaic_0001>
module attributes {stable_mosaic.version = 11 : i64} {
  func.func @_twin_causal_kernel(%arg0: i32, %arg1: memref<128x9xf32, #tpu.memory_space<vmem>>, %arg2: memref<128x9xf32, #tpu.memory_space<vmem>>, %arg3: memref<1x1x128xf32, #tpu.memory_space<vmem>>, %arg4: memref<9x32xf32, #tpu.memory_space<vmem>>, %arg5: memref<1x32xf32, #tpu.memory_space<vmem>>, %arg6: memref<1x32xf32, #tpu.memory_space<vmem>>, %arg7: memref<1x32xf32, #tpu.memory_space<vmem>>, %arg8: memref<1x1xf32, #tpu.memory_space<vmem>>, %arg9: memref<1x1x128xf32, #tpu.memory_space<vmem>>, %arg10: memref<1x1x128xf32, #tpu.memory_space<vmem>>, %arg11: memref<1x1x128xf32, #tpu.memory_space<vmem>>) attributes {dimension_semantics = [#tpu.dimension_semantics<parallel>], iteration_bounds = array<i64: 1>, scalar_prefetch = 0 : i64, scratch_operands = 0 : i64, tpu.core_type = #tpu.core_type<tc>, window_params = [{transform_indices = @transform_0, window_bounds = array<i64: 128, 9>}, {transform_indices = @transform_1, window_bounds = array<i64: 128, 9>}, {transform_indices = @transform_2, window_bounds = array<i64: 1, 1, 128>}, {pipeline_mode = #tpu.pipeline_mode<synchronous>, transform_indices = @transform_3, window_bounds = array<i64: 9, 32>}, {pipeline_mode = #tpu.pipeline_mode<synchronous>, transform_indices = @transform_4, window_bounds = array<i64: 1, 32>}, {pipeline_mode = #tpu.pipeline_mode<synchronous>, transform_indices = @transform_5, window_bounds = array<i64: 1, 32>}, {pipeline_mode = #tpu.pipeline_mode<synchronous>, transform_indices = @transform_6, window_bounds = array<i64: 1, 32>}, {pipeline_mode = #tpu.pipeline_mode<synchronous>, transform_indices = @transform_7, window_bounds = array<i64: 1, 1>}, {transform_indices = @transform_8, window_bounds = array<i64: 1, 1, 128>}, {transform_indices = @transform_9, window_bounds = array<i64: 1, 1, 128>}, {transform_indices = @transform_10, window_bounds = array<i64: 1, 1, 128>}]} {
    %c0 = arith.constant 0 : index
    %c0_0 = arith.constant 0 : index
    %0 = vector.load %arg4[%c0, %c0_0] : memref<9x32xf32, #tpu.memory_space<vmem>>, vector<9x32xf32>
    %c0_1 = arith.constant 0 : index
    %c0_2 = arith.constant 0 : index
    %1 = vector.load %arg5[%c0_1, %c0_2] : memref<1x32xf32, #tpu.memory_space<vmem>>, vector<1x32xf32>
    %c0_3 = arith.constant 0 : index
    %c0_4 = arith.constant 0 : index
    %2 = vector.load %arg6[%c0_3, %c0_4] : memref<1x32xf32, #tpu.memory_space<vmem>>, vector<1x32xf32>
    %c0_5 = arith.constant 0 : index
    %c0_6 = arith.constant 0 : index
    %3 = vector.load %arg7[%c0_5, %c0_6] : memref<1x32xf32, #tpu.memory_space<vmem>>, vector<1x32xf32>
    %c0_7 = arith.constant 0 : index
    %c0_8 = arith.constant 0 : index
    %4 = vector.load %arg8[%c0_7, %c0_8] : memref<1x1xf32, #tpu.memory_space<vmem>>, vector<1x1xf32>
    %c0_9 = arith.constant 0 : index
    %c0_10 = arith.constant 0 : index
    %5 = vector.load %arg1[%c0_9, %c0_10] : memref<128x9xf32, #tpu.memory_space<vmem>>, vector<128x9xf32>
    %c0_11 = arith.constant 0 : index
    %c0_12 = arith.constant 0 : index
    %6 = vector.load %arg2[%c0_11, %c0_12] : memref<128x9xf32, #tpu.memory_space<vmem>>, vector<128x9xf32>
    %7 = tpu.concatenate %5, %6 in 0 : vector<128x9xf32>, vector<128x9xf32> -> vector<256x9xf32>
    %cst = arith.constant dense<0.000000e+00> : vector<256x32xf32>
    %8 = tpu.matmul %7, %0, %cst {dimension_numbers = #tpu.dot_dimension_numbers<[1], [0], [0], [1], [0, 0, 1, 1], [], []>} : vector<256x9xf32>, vector<9x32xf32>, vector<256x32xf32> -> vector<256x32xf32>
    %9 = vector.broadcast %1 : vector<1x32xf32> to vector<256x32xf32>
    %10 = arith.addf %8, %9 : vector<256x32xf32>
    %11 = vector.broadcast %2 : vector<1x32xf32> to vector<256x32xf32>
    %12 = arith.mulf %10, %11 : vector<256x32xf32>
    %cst_13 = arith.constant 0.000000e+00 : f32
    %13 = vector.broadcast %cst_13 : f32 to vector<256x32xf32>
    %14 = arith.cmpf ogt, %12, %13 : vector<256x32xf32>
    %cst_14 = arith.constant 0.000000e+00 : f32
    %15 = vector.broadcast %cst_14 : f32 to vector<256x32xf32>
    %16 = arith.mulf %15, %12 : vector<256x32xf32>
    %17 = arith.select %14, %12, %16 : vector<256x32xi1>, vector<256x32xf32>
    %cst_15 = arith.constant dense<0.000000e+00> : vector<1x256xf32>
    %18 = tpu.matmul %3, %17, %cst_15 {dimension_numbers = #tpu.dot_dimension_numbers<[1], [1], [0], [0], [0, 0, 1, 0], [], []>} : vector<1x32xf32>, vector<256x32xf32>, vector<1x256xf32> -> vector<1x256xf32>
    %19 = vector.broadcast %4 : vector<1x1xf32> to vector<1x256xf32>
    %20 = arith.addf %18, %19 : vector<1x256xf32>
    %21 = arith.negf %20 : vector<1x256xf32>
    %22 = math.exp %21 : vector<1x256xf32>
    %cst_16 = arith.constant 1.000000e+00 : f32
    %23 = vector.broadcast %cst_16 : f32 to vector<1x256xf32>
    %24 = arith.addf %23, %22 : vector<1x256xf32>
    %25 = arith.divf %23, %24 : vector<1x256xf32>
    %26 = vector.extract_strided_slice %25 {offsets = [0, 0], sizes = [1, 128], strides = [1, 1]} : vector<1x256xf32> to vector<1x128xf32>
    %27 = vector.extract_strided_slice %25 {offsets = [0, 128], sizes = [1, 128], strides = [1, 1]} : vector<1x256xf32> to vector<1x128xf32>
    %c0_17 = arith.constant 0 : index
    %c0_18 = arith.constant 0 : index
    %c0_19 = arith.constant 0 : index
    %28 = vector.load %arg3[%c0_17, %c0_18, %c0_19] : memref<1x1x128xf32, #tpu.memory_space<vmem>>, vector<1x1x128xf32>
    %29 = vector.shape_cast %28 : vector<1x1x128xf32> to vector<1x128xf32>
    %c0_20 = arith.constant 0 : index
    %c0_21 = arith.constant 0 : index
    %c0_22 = arith.constant 0 : index
    %30 = vector.load %arg10[%c0_20, %c0_21, %c0_22] : memref<1x1x128xf32, #tpu.memory_space<vmem>>, vector<1x1x128xf32>
    %31 = vector.shape_cast %30 : vector<1x1x128xf32> to vector<1x128xf32>
    %32 = vector.shape_cast %26 : vector<1x128xf32> to vector<1x1x128xf32>
    tpu.vector_store %arg10[%c0_20, %c0_21, %c0_22], %32 {strides = array<i32>} : memref<1x1x128xf32, #tpu.memory_space<vmem>>, vector<1x1x128xf32>,
    %c0_23 = arith.constant 0 : index
    %c0_24 = arith.constant 0 : index
    %c0_25 = arith.constant 0 : index
    %33 = vector.load %arg11[%c0_23, %c0_24, %c0_25] : memref<1x1x128xf32, #tpu.memory_space<vmem>>, vector<1x1x128xf32>
    %34 = vector.shape_cast %33 : vector<1x1x128xf32> to vector<1x128xf32>
    %35 = vector.shape_cast %27 : vector<1x128xf32> to vector<1x1x128xf32>
    tpu.vector_store %arg11[%c0_23, %c0_24, %c0_25], %35 {strides = array<i32>} : memref<1x1x128xf32, #tpu.memory_space<vmem>>, vector<1x1x128xf32>,
    %36 = arith.mulf %26, %29 : vector<1x128xf32>
    %cst_26 = arith.constant 1.000000e+00 : f32
    %37 = vector.broadcast %cst_26 : f32 to vector<1x128xf32>
    %38 = arith.subf %37, %29 : vector<1x128xf32>
    %39 = arith.mulf %27, %38 : vector<1x128xf32>
    %40 = arith.addf %36, %39 : vector<1x128xf32>
    %c0_27 = arith.constant 0 : index
    %c0_28 = arith.constant 0 : index
    %c0_29 = arith.constant 0 : index
    %41 = vector.load %arg9[%c0_27, %c0_28, %c0_29] : memref<1x1x128xf32, #tpu.memory_space<vmem>>, vector<1x1x128xf32>
    %42 = vector.shape_cast %41 : vector<1x1x128xf32> to vector<1x128xf32>
    %43 = vector.shape_cast %40 : vector<1x128xf32> to vector<1x1x128xf32>
    tpu.vector_store %arg9[%c0_27, %c0_28, %c0_29], %43 {strides = array<i32>} : memref<1x1x128xf32, #tpu.memory_space<vmem>>, vector<1x1x128xf32>,
    return
  }
  func.func @transform_0(%arg0: i32) -> (i32, i32) {
    %c0_i32 = arith.constant 0 : i32
    %c0_i32_0 = arith.constant 0 : i32
    return %arg0, %c0_i32 : i32, i32
  }
  func.func @transform_1(%arg0: i32) -> (i32, i32) {
    %c0_i32 = arith.constant 0 : i32
    %c0_i32_0 = arith.constant 0 : i32
    return %arg0, %c0_i32 : i32, i32
  }
  func.func @transform_2(%arg0: i32) -> (i32, i32, i32) {
    %c0_i32 = arith.constant 0 : i32
    %c0_i32_0 = arith.constant 0 : i32
    %c0_i32_1 = arith.constant 0 : i32
    return %arg0, %c0_i32, %c0_i32_0 : i32, i32, i32
  }
  func.func @transform_3(%arg0: i32) -> (i32, i32) {
    %c0_i32 = arith.constant 0 : i32
    %c0_i32_0 = arith.constant 0 : i32
    %c0_i32_1 = arith.constant 0 : i32
    return %c0_i32, %c0_i32_0 : i32, i32
  }
  func.func @transform_4(%arg0: i32) -> (i32, i32) {
    %c0_i32 = arith.constant 0 : i32
    %c0_i32_0 = arith.constant 0 : i32
    %c0_i32_1 = arith.constant 0 : i32
    return %c0_i32, %c0_i32_0 : i32, i32
  }
  func.func @transform_5(%arg0: i32) -> (i32, i32) {
    %c0_i32 = arith.constant 0 : i32
    %c0_i32_0 = arith.constant 0 : i32
    %c0_i32_1 = arith.constant 0 : i32
    return %c0_i32, %c0_i32_0 : i32, i32
  }
  func.func @transform_6(%arg0: i32) -> (i32, i32) {
    %c0_i32 = arith.constant 0 : i32
    %c0_i32_0 = arith.constant 0 : i32
    %c0_i32_1 = arith.constant 0 : i32
    return %c0_i32, %c0_i32_0 : i32, i32
  }
  func.func @transform_7(%arg0: i32) -> (i32, i32) {
    %c0_i32 = arith.constant 0 : i32
    %c0_i32_0 = arith.constant 0 : i32
    %c0_i32_1 = arith.constant 0 : i32
    return %c0_i32, %c0_i32_0 : i32, i32
  }
  func.func @transform_8(%arg0: i32) -> (i32, i32, i32) {
    %c0_i32 = arith.constant 0 : i32
    %c0_i32_0 = arith.constant 0 : i32
    %c0_i32_1 = arith.constant 0 : i32
    return %arg0, %c0_i32, %c0_i32_0 : i32, i32, i32
  }
  func.func @transform_9(%arg0: i32) -> (i32, i32, i32) {
    %c0_i32 = arith.constant 0 : i32
    %c0_i32_0 = arith.constant 0 : i32
    %c0_i32_1 = arith.constant 0 : i32
    return %arg0, %c0_i32, %c0_i32_0 : i32, i32, i32
  }
  func.func @transform_10(%arg0: i32) -> (i32, i32, i32) {
    %c0_i32 = arith.constant 0 : i32
    %c0_i32_0 = arith.constant 0 : i32
    %c0_i32_1 = arith.constant 0 : i32
    return %arg0, %c0_i32, %c0_i32_0 : i32, i32, i32
  }
}

</mosaic_0001>

<llo_original>
// kernel: tpu_custom_call.1
$region0: #{tpu_custom_call.1}
  #allocation0 [shape = 'u32[]', space=smem, size = 0x4, offset = 0x4, fixed_abs, tag = 'smem constant byte address 0x4 - core index']
  #allocation1 [shape = 'u32[144,128]{1,0:T(1,128)}', space=vmem, size = 0x12000, scoped, tag = 'internal scratch']
  #allocation2 [shape = 'f32[1,1]{1,0:T(1,128)S(1)}', space=vmem, size = 0x200, scoped, tag = 'scoped memory for tpu_custom_call.1']
  %s0 = inlined_call_operand.vmem [shape: f32[128,9], index: 0, kind: input, shape index: {}]
  %s1 = inlined_call_operand.vmem [shape: f32[128,9], index: 1, kind: input, shape index: {}]
  %s2 = inlined_call_operand.vmem [shape: f32[1,1,128], index: 2, kind: input, shape index: {}]
  %s3 = inlined_call_operand.vmem [shape: f32[9,32], index: 3, kind: input, shape index: {}]
  %s4 = inlined_call_operand.vmem [shape: f32[1,32], index: 4, kind: input, shape index: {}]
  %s5 = inlined_call_operand.vmem [shape: f32[1,32], index: 5, kind: input, shape index: {}]
  %s6 = inlined_call_operand.vmem [shape: f32[1,32], index: 6, kind: input, shape index: {}]
  %s7 = inlined_call_operand.<no memory space> [shape: f32[1,1], index: 7, kind: input, shape index: {}]
  %s8 = inlined_call_operand.hbm [shape: f32[1,1,128], index: 8, kind: output, shape index: {0}]
  %s9 = inlined_call_operand.hbm [shape: f32[1,1,128], index: 9, kind: output, shape index: {1}]
  %s10 = inlined_call_operand.hbm [shape: f32[1,1,128], index: 10, kind: output, shape index: {2}]
  %11 = xla_tuple %s8, %s9, %s10
  %s12 = sld [smem:[#allocation0]]
  $region58: #{tpu_custom_call.1} parent=0
    _
  %s14 = ssub.s32 1, %s12
  %s15 = scalar_select 0, %s14, %s12
  %v16 = vstv %s7
  %17 = vst [vmem:[#allocation2] sm:$0x1] %v16
  $region1: #{tpu_custom_call.1} parent=0
    #allocation3 [shape = 'u8[512]{0}', space=vmem, size = 0x400, scoped, tag = 'output window, operand 0, single buffered']
    #allocation4 [shape = 's32[1]{0}', space=sflag, size = 0x4, scoped, tag = 'scoped memory for tpu_custom_call.1']
    #allocation5 [shape = 'u8[512]{0}', space=vmem, size = 0x400, scoped, tag = 'output window, operand 1, single buffered']
    #allocation6 [shape = 's32[1]{0}', space=sflag, size = 0x4, scoped, tag = 'scoped memory for tpu_custom_call.1']
    #allocation7 [shape = 'u8[512]{0}', space=vmem, size = 0x400, scoped, tag = 'output window, operand 2, single buffered']
    %18 = vsyncpa [#allocation4], 0
    %19 = vsyncpa [#allocation6], 0
    // Predicated region
    $region2: #{tpu_custom_call.1} parent=1 // pred_check
      _
    $region3: #{tpu_custom_call.1} parent=1 // pred_check_branch
      %21 = sbr.rel (0) target = $region5
    $region4: #{tpu_custom_call.1} parent=1 // pred_region
      _
    $region5: #{tpu_custom_call.1} parent=1 // pred_fallthru
      _
    // Predicated region
    $region6: #{tpu_custom_call.1} parent=1 // pred_check
      _
    $region7: #{tpu_custom_call.1} parent=1 // pred_check_branch
      %23 = sbr.rel (0) target = $region9
    $region8: #{tpu_custom_call.1} parent=1 // pred_region
      _
    $region9: #{tpu_custom_call.1} parent=1 // pred_fallthru
      _
    // Predicated region
    $region10: #{tpu_custom_call.1} parent=1 // pred_check
      _
    $region11: #{tpu_custom_call.1} parent=1 // pred_check_branch
      %25 = sbr.rel (0) target = $region13
    $region12: #{tpu_custom_call.1} parent=1 // pred_region
      _
    $region13: #{tpu_custom_call.1} parent=1 // pred_fallthru
      _
    // Predicated region
    $region14: #{tpu_custom_call.1} parent=1 // pred_check
      _
    $region15: #{tpu_custom_call.1} parent=1 // pred_check_branch
      %27 = sbr.rel (0) target = $region17
    $region16: #{tpu_custom_call.1} parent=1 // pred_region
      _
    $region17: #{tpu_custom_call.1} parent=1 // pred_fallthru
      _
    // Predicated region
    $region18: #{tpu_custom_call.1} parent=1 // pred_check
      _
    $region19: #{tpu_custom_call.1} parent=1 // pred_check_branch
      %29 = sbr.rel (0) target = $region21
    $region20: #{tpu_custom_call.1} parent=1 // pred_region
      _
    $region21: #{tpu_custom_call.1} parent=1 // pred_fallthru
      _
    // Predicated region
    $region22: #{tpu_custom_call.1} parent=1 // pred_check
      _
    $region23: #{tpu_custom_call.1} parent=1 // pred_check_branch
      %31 = sbr.rel (0) target = $region25
    $region24: #{tpu_custom_call.1} parent=1 // pred_region
      _
    $region25: #{tpu_custom_call.1} parent=1 // pred_fallthru
      _
    // Predicated region
    $region26: #{tpu_custom_call.1} parent=1 // pred_check
      _
    $region27: #{tpu_custom_call.1} parent=1 // pred_check_branch
      %33 = sbr.rel (0) target = $region29
    $region28: #{tpu_custom_call.1} parent=1 // pred_region
      _
    $region29: #{tpu_custom_call.1} parent=1 // pred_fallthru
      _
    // Predicated region
    $region30: #{tpu_custom_call.1} parent=1 // pred_check
      _
    $region31: #{tpu_custom_call.1} parent=1 // pred_check_branch
      %35 = sbr.rel (0) target = $region33
    $region32: #{tpu_custom_call.1} parent=1 // pred_region
      _
    $region33: #{tpu_custom_call.1} parent=1 // pred_fallthru
      _
    %v36 = vld [vmem:[%s3] sm:$0xff]
    %v37 = vld [vmem:[%s3 + $0x8] sm:$0x1]
    %v38 = vld [vmem:[%s4] sm:$0x1]
    %v39 = vld [vmem:[%s5] sm:$0x1]
    %v40 = vld [vmem:[%s6] sm:$0x1]
    %v41 = vld [vmem:[#allocation2] sm:$0x1]
    %v42 = vld [vmem:[%s0] sm:$0xff]
    %v43 = vld [vmem:[%s0 + $0x8] sm:$0xff]
    %v44 = vld [vmem:[%s0 + $0x10] sm:$0xff]
    %v45 = vld [vmem:[%s0 + $0x18] sm:$0xff]
    %v46 = vld [vmem:[%s0 + $0x20] sm:$0xff]
    %v47 = vld [vmem:[%s0 + $0x28] sm:$0xff]
    %v48 = vld [vmem:[%s0 + $0x30] sm:$0xff]
    %v49 = vld [vmem:[%s0 + $0x38] sm:$0xff]
    %v50 = vld [vmem:[%s0 + $0x40] sm:$0xff]
    %v51 = vld [vmem:[%s0 + $0x48] sm:$0xff]
    %v52 = vld [vmem:[%s0 + $0x50] sm:$0xff]
    %v53 = vld [vmem:[%s0 + $0x58] sm:$0xff]
    %v54 = vld [vmem:[%s0 + $0x60] sm:$0xff]
    %v55 = vld [vmem:[%s0 + $0x68] sm:$0xff]
    %v56 = vld [vmem:[%s0 + $0x70] sm:$0xff]
    %v57 = vld [vmem:[%s0 + $0x78] sm:$0xff]
    %v58 = vld [vmem:[%s1] sm:$0xff]
    %v59 = vld [vmem:[%s1 + $0x8] sm:$0xff]
    %v60 = vld [vmem:[%s1 + $0x10] sm:$0xff]
    %v61 = vld [vmem:[%s1 + $0x18] sm:$0xff]
    %v62 = vld [vmem:[%s1 + $0x20] sm:$0xff]
    %v63 = vld [vmem:[%s1 + $0x28] sm:$0xff]
    %v64 = vld [vmem:[%s1 + $0x30] sm:$0xff]
    %v65 = vld [vmem:[%s1 + $0x38] sm:$0xff]
    %v66 = vld [vmem:[%s1 + $0x40] sm:$0xff]
    %v67 = vld [vmem:[%s1 + $0x48] sm:$0xff]
    %v68 = vld [vmem:[%s1 + $0x50] sm:$0xff]
    %v69 = vld [vmem:[%s1 + $0x58] sm:$0xff]
    %v70 = vld [vmem:[%s1 + $0x60] sm:$0xff]
    %v71 = vld [vmem:[%s1 + $0x68] sm:$0xff]
    %v72 = vld [vmem:[%s1 + $0x70] sm:$0xff]
    %v73 = vld [vmem:[%s1 + $0x78] sm:$0xff]
    %v75 = vlaneseq
    %v76 = vshrl.u32 %v75, 7
    %v77 = vsub.s32 0, %v76
    %v78 = vrot.slane %v38, %v77
    %vm80 = vcmask 72704
    %v82 = vsel %vm80, %v42, 0
    %v85 = vsel %vm80, %v43, 0
    %v88 = vsel %vm80, %v44, 0
    %v91 = vsel %vm80, %v45, 0
    %v94 = vsel %vm80, %v46, 0
    %v97 = vsel %vm80, %v47, 0
    %v100 = vsel %vm80, %v48, 0
    %v103 = vsel %vm80, %v49, 0
    %v106 = vsel %vm80, %v50, 0
    %v109 = vsel %vm80, %v51, 0
    %v112 = vsel %vm80, %v52, 0
    %v115 = vsel %vm80, %v53, 0
    %v118 = vsel %vm80, %v54, 0
    %v121 = vsel %vm80, %v55, 0
    %v124 = vsel %vm80, %v56, 0
    %v127 = vsel %vm80, %v57, 0
    %v130 = vsel %vm80, %v58, 0
    %v133 = vsel %vm80, %v59, 0
    %v136 = vsel %vm80, %v60, 0
    %v139 = vsel %vm80, %v61, 0
    %v142 = vsel %vm80, %v62, 0
    %v145 = vsel %vm80, %v63, 0
    %v148 = vsel %vm80, %v64, 0
    %v151 = vsel %vm80, %v65, 0
    %v154 = vsel %vm80, %v66, 0
    %v157 = vsel %vm80, %v67, 0
    %v160 = vsel %vm80, %v68, 0
    %v163 = vsel %vm80, %v69, 0
    %v166 = vsel %vm80, %v70, 0
    %v169 = vsel %vm80, %v71, 0
    %v172 = vsel %vm80, %v72, 0
    %v175 = vsel %vm80, %v73, 0
    %vm177 = vcmask 1040384
    %v179 = vsel %vm177, %v37, 0
    %181 = vmatprep.subr.mxu0 0.0
    %182 = vmatpush1.msra.mxu0 0.0
    %183 = vmatprep.subr.mxu0 0.0
    %184 = vmatpush1.msra.mxu0 0.0
    %185 = vmatprep.subr.mxu0 0.0
    %186 = vmatpush1.msra.mxu0 0.0
    %187 = vmatprep.subr.mxu0 0.0
    %188 = vmatpush1.msra.mxu0 0.0
    %189 = vmatprep.subr.mxu0 0.0
    %190 = vmatpush1.msra.mxu0 0.0
    %191 = vmatprep.subr.mxu0 0.0
    %192 = vmatpush1.msra.mxu0 0.0
    %193 = vmatprep.subr.mxu0 0.0
    %194 = vmatpush1.msra.mxu0 0.0
    %195 = vmatprep.subr.mxu0 0.0
    %196 = vmatpush1.msra.mxu0 0.0
    %197 = vmatprep.subr.mxu0 0.0
    %198 = vmatpush1.msra.mxu0 0.0
    %199 = vmatprep.subr.mxu0 0.0
    %200 = vmatpush1.msra.mxu0 0.0
    %201 = vmatprep.subr.mxu0 0.0
    %202 = vmatpush1.msra.mxu0 0.0
    %203 = vmatprep.subr.mxu0 0.0
    %204 = vmatpush1.msra.mxu0 0.0
    %205 = vmatprep.subr.mxu0 0.0
    %206 = vmatpush1.msra.mxu0 0.0
    %207 = vmatprep.subr.mxu0 0.0
    %208 = vmatpush1.msra.mxu0 0.0
    %209 = vmatprep.subr.mxu0 0.0
    %210 = vmatpush1.msra.mxu0 %v179
    %211 = vmatprep.subr.mxu0 0.0
    %212 = vmatpush1.msra.mxu0 %v36
    %213 = vmatprep.subr.mxu0 0.0
    %214 = vmatpush2.msra.mxu0 0.0
    %215 = vmatprep.subr.mxu0 0.0
    %216 = vmatpush2.msra.mxu0 0.0
    %217 = vmatprep.subr.mxu0 0.0
    %218 = vmatpush2.msra.mxu0 0.0
    %219 = vmatprep.subr.mxu0 0.0
    %220 = vmatpush2.msra.mxu0 0.0
    %221 = vmatprep.subr.mxu0 0.0
    %222 = vmatpush2.msra.mxu0 0.0
    %223 = vmatprep.subr.mxu0 0.0
    %224 = vmatpush2.msra.mxu0 0.0
    %225 = vmatprep.subr.mxu0 0.0
    %226 = vmatpush2.msra.mxu0 0.0
    %227 = vmatprep.subr.mxu0 0.0
    %228 = vmatpush2.msra.mxu0 0.0
    %229 = vmatprep.subr.mxu0 0.0
    %230 = vmatpush2.msra.mxu0 0.0
    %231 = vmatprep.subr.mxu0 0.0
    %232 = vmatpush2.msra.mxu0 0.0
    %233 = vmatprep.subr.mxu0 0.0
    %234 = vmatpush2.msra.mxu0 0.0
    %235 = vmatprep.subr.mxu0 0.0
    %236 = vmatpush2.msra.mxu0 0.0
    %237 = vmatprep.subr.mxu0 0.0
    %238 = vmatpush2.msra.mxu0 0.0
    %239 = vmatprep.subr.mxu0 0.0
    %240 = vmatpush2.msra.mxu0 0.0
    %241 = vmatprep.subr.mxu0 0.0
    %242 = vmatpush2.msra.mxu0 0.0
    %243 = vmatprep.subr.mxu0 0.0
    %244 = vmatpush2.msra.mxu0 0.0
    %245 = vmatprep.mubr.f32.mxu0 0.0
    %246 = vmatmul.mubr.f32.gmra.mxu0 %v82
    %v247 = vpop.f32.mrf.mxu0
    %v248 = vadd.f32 %v78, %v247
    %v249 = vpop.f32.mrf.mxu0
    %250 = vmatprep.mubr.f32.mxu0 0.0
    %251 = vmatmul.mubr.f32.gmra.mxu0 %v85
    %v252 = vpop.f32.mrf.mxu0
    %v253 = vadd.f32 %v78, %v252
    %v254 = vpop.f32.mrf.mxu0
    %255 = vmatprep.mubr.f32.mxu0 0.0
    %256 = vmatmul.mubr.f32.gmra.mxu0 %v88
    %v257 = vpop.f32.mrf.mxu0
    %v258 = vadd.f32 %v78, %v257
    %v259 = vpop.f32.mrf.mxu0
    %260 = vmatprep.mubr.f32.mxu0 0.0
    %261 = vmatmul.mubr.f32.gmra.mxu0 %v91
    %v262 = vpop.f32.mrf.mxu0
    %v263 = vadd.f32 %v78, %v262
    %v264 = vpop.f32.mrf.mxu0
    %265 = vmatprep.mubr.f32.mxu0 0.0
    %266 = vmatmul.mubr.f32.gmra.mxu0 %v94
    %v267 = vpop.f32.mrf.mxu0
    %v268 = vadd.f32 %v78, %v267
    %v269 = vpop.f32.mrf.mxu0
    %270 = vmatprep.mubr.f32.mxu0 0.0
    %271 = vmatmul.mubr.f32.gmra.mxu0 %v97
    %v272 = vpop.f32.mrf.mxu0
    %v273 = vadd.f32 %v78, %v272
    %v274 = vpop.f32.mrf.mxu0
    %275 = vmatprep.mubr.f32.mxu0 0.0
    %276 = vmatmul.mubr.f32.gmra.mxu0 %v100
    %v277 = vpop.f32.mrf.mxu0
    %v278 = vadd.f32 %v78, %v277
    %v279 = vpop.f32.mrf.mxu0
    %280 = vmatprep.mubr.f32.mxu0 0.0
    %281 = vmatmul.mubr.f32.gmra.mxu0 %v103
    %v282 = vpop.f32.mrf.mxu0
    %v283 = vadd.f32 %v78, %v282
    %v284 = vpop.f32.mrf.mxu0
    %285 = vmatprep.mubr.f32.mxu0 0.0
    %286 = vmatmul.mubr.f32.gmra.mxu0 %v106
    %v287 = vpop.f32.mrf.mxu0
    %v288 = vadd.f32 %v78, %v287
    %v289 = vpop.f32.mrf.mxu0
    %290 = vmatprep.mubr.f32.mxu0 0.0
    %291 = vmatmul.mubr.f32.gmra.mxu0 %v109
    %v292 = vpop.f32.mrf.mxu0
    %v293 = vadd.f32 %v78, %v292
    %v294 = vpop.f32.mrf.mxu0
    %295 = vmatprep.mubr.f32.mxu0 0.0
    %296 = vmatmul.mubr.f32.gmra.mxu0 %v112
    %v297 = vpop.f32.mrf.mxu0
    %v298 = vadd.f32 %v78, %v297
    %v299 = vpop.f32.mrf.mxu0
    %300 = vmatprep.mubr.f32.mxu0 0.0
    %301 = vmatmul.mubr.f32.gmra.mxu0 %v115
    %v302 = vpop.f32.mrf.mxu0
    %v303 = vadd.f32 %v78, %v302
    %v304 = vpop.f32.mrf.mxu0
    %305 = vmatprep.mubr.f32.mxu0 0.0
    %306 = vmatmul.mubr.f32.gmra.mxu0 %v118
    %v307 = vpop.f32.mrf.mxu0
    %v308 = vadd.f32 %v78, %v307
    %v309 = vpop.f32.mrf.mxu0
    %310 = vmatprep.mubr.f32.mxu0 0.0
    %311 = vmatmul.mubr.f32.gmra.mxu0 %v121
    %v312 = vpop.f32.mrf.mxu0
    %v313 = vadd.f32 %v78, %v312
    %v314 = vpop.f32.mrf.mxu0
    %315 = vmatprep.mubr.f32.mxu0 0.0
    %316 = vmatmul.mubr.f32.gmra.mxu0 %v124
    %v317 = vpop.f32.mrf.mxu0
    %v318 = vadd.f32 %v78, %v317
    %v319 = vpop.f32.mrf.mxu0
    %320 = vmatprep.mubr.f32.mxu0 0.0
    %321 = vmatmul.mubr.f32.gmra.mxu0 %v127
    %v322 = vpop.f32.mrf.mxu0
    %v323 = vadd.f32 %v78, %v322
    %v324 = vpop.f32.mrf.mxu0
    %325 = vmatprep.mubr.f32.mxu0 0.0
    %326 = vmatmul.mubr.f32.gmra.mxu0 %v130
    %v327 = vpop.f32.mrf.mxu0
    %v328 = vadd.f32 %v78, %v327
    %v329 = vpop.f32.mrf.mxu0
    %330 = vmatprep.mubr.f32.mxu0 0.0
    %331 = vmatmul.mubr.f32.gmra.mxu0 %v133
    %v332 = vpop.f32.mrf.mxu0
    %v333 = vadd.f32 %v78, %v332
    %v334 = vpop.f32.mrf.mxu0
    %335 = vmatprep.mubr.f32.mxu0 0.0
    %336 = vmatmul.mubr.f32.gmra.mxu0 %v136
    %v337 = vpop.f32.mrf.mxu0
    %v338 = vadd.f32 %v78, %v337
    %v339 = vpop.f32.mrf.mxu0
    %340 = vmatprep.mubr.f32.mxu0 0.0
    %341 = vmatmul.mubr.f32.gmra.mxu0 %v139
    %v342 = vpop.f32.mrf.mxu0
    %v343 = vadd.f32 %v78, %v342
    %v344 = vpop.f32.mrf.mxu0
    %345 = vmatprep.mubr.f32.mxu0 0.0
    %346 = vmatmul.mubr.f32.gmra.mxu0 %v142
    %v347 = vpop.f32.mrf.mxu0
    %v348 = vadd.f32 %v78, %v347
    %v349 = vpop.f32.mrf.mxu0
    %350 = vmatprep.mubr.f32.mxu0 0.0
    %351 = vmatmul.mubr.f32.gmra.mxu0 %v145
    %v352 = vpop.f32.mrf.mxu0
    %v353 = vadd.f32 %v78, %v352
    %v354 = vpop.f32.mrf.mxu0
    %355 = vmatprep.mubr.f32.mxu0 0.0
    %356 = vmatmul.mubr.f32.gmra.mxu0 %v148
    %v357 = vpop.f32.mrf.mxu0
    %v358 = vadd.f32 %v78, %v357
    %v359 = vpop.f32.mrf.mxu0
    %360 = vmatprep.mubr.f32.mxu0 0.0
    %361 = vmatmul.mubr.f32.gmra.mxu0 %v151
    %v362 = vpop.f32.mrf.mxu0
    %v363 = vadd.f32 %v78, %v362
    %v364 = vpop.f32.mrf.mxu0
    %365 = vmatprep.mubr.f32.mxu0 0.0
    %366 = vmatmul.mubr.f32.gmra.mxu0 %v154
    %v367 = vpop.f32.mrf.mxu0
    %v368 = vadd.f32 %v78, %v367
    %v369 = vpop.f32.mrf.mxu0
    %370 = vmatprep.mubr.f32.mxu0 0.0
    %371 = vmatmul.mubr.f32.gmra.mxu0 %v157
    %v372 = vpop.f32.mrf.mxu0
    %v373 = vadd.f32 %v78, %v372
    %v374 = vpop.f32.mrf.mxu0
    %375 = vmatprep.mubr.f32.mxu0 0.0
    %376 = vmatmul.mubr.f32.gmra.mxu0 %v160
    %v377 = vpop.f32.mrf.mxu0
    %v378 = vadd.f32 %v78, %v377
    %v379 = vpop.f32.mrf.mxu0
    %380 = vmatprep.mubr.f32.mxu0 0.0
    %381 = vmatmul.mubr.f32.gmra.mxu0 %v163
    %v382 = vpop.f32.mrf.mxu0
    %v383 = vadd.f32 %v78, %v382
    %v384 = vpop.f32.mrf.mxu0
    %385 = vmatprep.mubr.f32.mxu0 0.0
    %386 = vmatmul.mubr.f32.gmra.mxu0 %v166
    %v387 = vpop.f32.mrf.mxu0
    %v388 = vadd.f32 %v78, %v387
    %v389 = vpop.f32.mrf.mxu0
    %390 = vmatprep.mubr.f32.mxu0 0.0
    %391 = vmatmul.mubr.f32.gmra.mxu0 %v169
    %v392 = vpop.f32.mrf.mxu0
    %v393 = vadd.f32 %v78, %v392
    %v394 = vpop.f32.mrf.mxu0
    %395 = vmatprep.mubr.f32.mxu0 0.0
    %396 = vmatmul.mubr.f32.gmra.mxu0 %v172
    %v397 = vpop.f32.mrf.mxu0
    %v398 = vadd.f32 %v78, %v397
    %v399 = vpop.f32.mrf.mxu0
    %400 = vmatprep.mubr.f32.mxu0 0.0
    %401 = vmatmul.mubr.f32.gmra.mxu0 %v175
    %v402 = vpop.f32.mrf.mxu0
    %v403 = vadd.f32 %v78, %v402
    %v404 = vpop.f32.mrf.mxu0
    %405 = vdwg.mxu0
    %v407 = vlaneseq
    %v408 = vshrl.u32 %v407, 7
    %v409 = vsub.s32 0, %v408
    %v410 = vrot.slane %v39, %v409
    %v412 = vmul.f32 %v248, %v410
    %v413 = vmul.f32 %v253, %v410
    %v414 = vmul.f32 %v258, %v410
    %v415 = vmul.f32 %v263, %v410
    %v416 = vmul.f32 %v268, %v410
    %v417 = vmul.f32 %v273, %v410
    %v418 = vmul.f32 %v278, %v410
    %v419 = vmul.f32 %v283, %v410
    %v420 = vmul.f32 %v288, %v410
    %v421 = vmul.f32 %v293, %v410
    %v422 = vmul.f32 %v298, %v410
    %v423 = vmul.f32 %v303, %v410
    %v424 = vmul.f32 %v308, %v410
    %v425 = vmul.f32 %v313, %v410
    %v426 = vmul.f32 %v318, %v410
    %v427 = vmul.f32 %v323, %v410
    %v428 = vmul.f32 %v328, %v410
    %v429 = vmul.f32 %v333, %v410
    %v430 = vmul.f32 %v338, %v410
    %v431 = vmul.f32 %v343, %v410
    %v432 = vmul.f32 %v348, %v410
    %v433 = vmul.f32 %v353, %v410
    %v434 = vmul.f32 %v358, %v410
    %v435 = vmul.f32 %v363, %v410
    %v436 = vmul.f32 %v368, %v410
    %v437 = vmul.f32 %v373, %v410
    %v438 = vmul.f32 %v378, %v410
    %v439 = vmul.f32 %v383, %v410
    %v440 = vmul.f32 %v388, %v410
    %v441 = vmul.f32 %v393, %v410
    %v442 = vmul.f32 %v398, %v410
    %v443 = vmul.f32 %v403, %v410
    %vm444 = vcmp.gt.f32.partialorder %v412, 0.0
    %vm445 = vcmp.gt.f32.partialorder %v413, 0.0
    %vm446 = vcmp.gt.f32.partialorder %v414, 0.0
    %vm447 = vcmp.gt.f32.partialorder %v415, 0.0
    %vm448 = vcmp.gt.f32.partialorder %v416, 0.0
    %vm449 = vcmp.gt.f32.partialorder %v417, 0.0
    %vm450 = vcmp.gt.f32.partialorder %v418, 0.0
    %vm451 = vcmp.gt.f32.partialorder %v419, 0.0
    %vm452 = vcmp.gt.f32.partialorder %v420, 0.0
    %vm453 = vcmp.gt.f32.partialorder %v421, 0.0
    %vm454 = vcmp.gt.f32.partialorder %v422, 0.0
    %vm455 = vcmp.gt.f32.partialorder %v423, 0.0
    %vm456 = vcmp.gt.f32.partialorder %v424, 0.0
    %vm457 = vcmp.gt.f32.partialorder %v425, 0.0
    %vm458 = vcmp.gt.f32.partialorder %v426, 0.0
    %vm459 = vcmp.gt.f32.partialorder %v427, 0.0
    %vm460 = vcmp.gt.f32.partialorder %v428, 0.0
    %vm461 = vcmp.gt.f32.partialorder %v429, 0.0
    %vm462 = vcmp.gt.f32.partialorder %v430, 0.0
    %vm463 = vcmp.gt.f32.partialorder %v431, 0.0
    %vm464 = vcmp.gt.f32.partialorder %v432, 0.0
    %vm465 = vcmp.gt.f32.partialorder %v433, 0.0
    %vm466 = vcmp.gt.f32.partialorder %v434, 0.0
    %vm467 = vcmp.gt.f32.partialorder %v435, 0.0
    %vm468 = vcmp.gt.f32.partialorder %v436, 0.0
    %vm469 = vcmp.gt.f32.partialorder %v437, 0.0
    %vm470 = vcmp.gt.f32.partialorder %v438, 0.0
    %vm471 = vcmp.gt.f32.partialorder %v439, 0.0
    %vm472 = vcmp.gt.f32.partialorder %v440, 0.0
    %vm473 = vcmp.gt.f32.partialorder %v441, 0.0
    %vm474 = vcmp.gt.f32.partialorder %v442, 0.0
    %vm475 = vcmp.gt.f32.partialorder %v443, 0.0
    %v476 = vmul.f32 %v412, 0.0
    %v477 = vmul.f32 %v413, 0.0
    %v478 = vmul.f32 %v414, 0.0
    %v479 = vmul.f32 %v415, 0.0
    %v480 = vmul.f32 %v416, 0.0
    %v481 = vmul.f32 %v417, 0.0
    %v482 = vmul.f32 %v418, 0.0
    %v483 = vmul.f32 %v419, 0.0
    %v484 = vmul.f32 %v420, 0.0
    %v485 = vmul.f32 %v421, 0.0
    %v486 = vmul.f32 %v422, 0.0
    %v487 = vmul.f32 %v423, 0.0
    %v488 = vmul.f32 %v424, 0.0
    %v489 = vmul.f32 %v425, 0.0
    %v490 = vmul.f32 %v426, 0.0
    %v491 = vmul.f32 %v427, 0.0
    %v492 = vmul.f32 %v428, 0.0
    %v493 = vmul.f32 %v429, 0.0
    %v494 = vmul.f32 %v430, 0.0
    %v495 = vmul.f32 %v431, 0.0
    %v496 = vmul.f32 %v432, 0.0
    %v497 = vmul.f32 %v433, 0.0
    %v498 = vmul.f32 %v434, 0.0
    %v499 = vmul.f32 %v435, 0.0
    %v500 = vmul.f32 %v436, 0.0
    %v501 = vmul.f32 %v437, 0.0
    %v502 = vmul.f32 %v438, 0.0
    %v503 = vmul.f32 %v439, 0.0
    %v504 = vmul.f32 %v440, 0.0
    %v505 = vmul.f32 %v441, 0.0
    %v506 = vmul.f32 %v442, 0.0
    %v507 = vmul.f32 %v443, 0.0
    %v508 = vsel %vm444, %v412, %v476
    %v509 = vsel %vm445, %v413, %v477
    %v510 = vsel %vm446, %v414, %v478
    %v511 = vsel %vm447, %v415, %v479
    %v512 = vsel %vm448, %v416, %v480
    %v513 = vsel %vm449, %v417, %v481
    %v514 = vsel %vm450, %v418, %v482
    %v515 = vsel %vm451, %v419, %v483
    %v516 = vsel %vm452, %v420, %v484
    %v517 = vsel %vm453, %v421, %v485
    %v518 = vsel %vm454, %v422, %v486
    %v519 = vsel %vm455, %v423, %v487
    %v520 = vsel %vm456, %v424, %v488
    %v521 = vsel %vm457, %v425, %v489
    %v522 = vsel %vm458, %v426, %v490
    %v523 = vsel %vm459, %v427, %v491
    %v524 = vsel %vm460, %v428, %v492
    %v525 = vsel %vm461, %v429, %v493
    %v526 = vsel %vm462, %v430, %v494
    %v527 = vsel %vm463, %v431, %v495
    %v528 = vsel %vm464, %v432, %v496
    %v529 = vsel %vm465, %v433, %v497
    %v530 = vsel %vm466, %v434, %v498
    %v531 = vsel %vm467, %v435, %v499
    %v532 = vsel %vm468, %v436, %v500
    %v533 = vsel %vm469, %v437, %v501
    %v534 = vsel %vm470, %v438, %v502
    %v535 = vsel %vm471, %v439, %v503
    %v536 = vsel %vm472, %v440, %v504
    %v537 = vsel %vm473, %v441, %v505
    %v538 = vsel %vm474, %v442, %v506
    %v539 = vsel %vm475, %v443, %v507
    %541 = vset.pattern.permute.xlu0 0
    %542 = vperm.xlu0 %541, %v41
    %v543 = vpop.permute.xlu0 %542
    %v545 = vlaneseq
    %v546 = vshrl.u32 %v545, 7
    %v547 = vsub.s32 0, %v546
    %v548 = vrot.slane %v543, %v547
    %vm549 = vcmask 261120
    %v551 = vsel %vm549, %v40, 0
    %v554 = vsel %vm549, %v508, 0
    %v557 = vsel %vm549, %v509, 0
    %v560 = vsel %vm549, %v510, 0
    %v563 = vsel %vm549, %v511, 0
    %v566 = vsel %vm549, %v512, 0
    %v569 = vsel %vm549, %v513, 0
    %v572 = vsel %vm549, %v514, 0
    %v575 = vsel %vm549, %v515, 0
    %v578 = vsel %vm549, %v516, 0
    %v581 = vsel %vm549, %v517, 0
    %v584 = vsel %vm549, %v518, 0
    %v587 = vsel %vm549, %v519, 0
    %v590 = vsel %vm549, %v520, 0
    %v593 = vsel %vm549, %v521, 0
    %v596 = vsel %vm549, %v522, 0
    %v599 = vsel %vm549, %v523, 0
    %v602 = vsel %vm549, %v524, 0
    %v605 = vsel %vm549, %v525, 0
    %v608 = vsel %vm549, %v526, 0
    %v611 = vsel %vm549, %v527, 0
    %v614 = vsel %vm549, %v528, 0
    %v617 = vsel %vm549, %v529, 0
    %v620 = vsel %vm549, %v530, 0
    %v623 = vsel %vm549, %v531, 0
    %v626 = vsel %vm549, %v532, 0
    %v629 = vsel %vm549, %v533, 0
    %v632 = vsel %vm549, %v534, 0
    %v635 = vsel %vm549, %v535, 0
    %v638 = vsel %vm549, %v536, 0
    %v641 = vsel %vm549, %v537, 0
    %v644 = vsel %vm549, %v538, 0
    %v647 = vsel %vm549, %v539, 0
    %649 = vmatprep.subr.mxu0 0.0
    %650 = vmatpush1.xpose.msra.mxu0 %v599
    %651 = vmatprep.subr.mxu0 0.0
    %652 = vmatpush1.xpose.msra.mxu0 %v596
    %653 = vmatprep.subr.mxu0 0.0
    %654 = vmatpush1.xpose.msra.mxu0 %v593
    %655 = vmatprep.subr.mxu0 0.0
    %656 = vmatpush1.xpose.msra.mxu0 %v590
    %657 = vmatprep.subr.mxu0 0.0
    %658 = vmatpush1.xpose.msra.mxu0 %v587
    %659 = vmatprep.subr.mxu0 0.0
    %660 = vmatpush1.xpose.msra.mxu0 %v584
    %661 = vmatprep.subr.mxu0 0.0
    %662 = vmatpush1.xpose.msra.mxu0 %v581
    %663 = vmatprep.subr.mxu0 0.0
    %664 = vmatpush1.xpose.msra.mxu0 %v578
    %665 = vmatprep.subr.mxu0 0.0
    %666 = vmatpush1.xpose.msra.mxu0 %v575
    %667 = vmatprep.subr.mxu0 0.0
    %668 = vmatpush1.xpose.msra.mxu0 %v572
    %669 = vmatprep.subr.mxu0 0.0
    %670 = vmatpush1.xpose.msra.mxu0 %v569
    %671 = vmatprep.subr.mxu0 0.0
    %672 = vmatpush1.xpose.msra.mxu0 %v566
    %673 = vmatprep.subr.mxu0 0.0
    %674 = vmatpush1.xpose.msra.mxu0 %v563
    %675 = vmatprep.subr.mxu0 0.0
    %676 = vmatpush1.xpose.msra.mxu0 %v560
    %677 = vmatprep.subr.mxu0 0.0
    %678 = vmatpush1.xpose.msra.mxu0 %v557
    %679 = vmatprep.subr.mxu0 0.0
    %680 = vmatpush1.xpose.msra.mxu0 %v554
    %681 = vmatprep.subr.mxu0 0.0
    %682 = vmatpush2.xpose.msra.mxu0 %v647
    %683 = vmatprep.subr.mxu0 0.0
    %684 = vmatpush2.xpose.msra.mxu0 %v644
    %685 = vmatprep.subr.mxu0 0.0
    %686 = vmatpush2.xpose.msra.mxu0 %v641
    %687 = vmatprep.subr.mxu0 0.0
    %688 = vmatpush2.xpose.msra.mxu0 %v638
    %689 = vmatprep.subr.mxu0 0.0
    %690 = vmatpush2.xpose.msra.mxu0 %v635
    %691 = vmatprep.subr.mxu0 0.0
    %692 = vmatpush2.xpose.msra.mxu0 %v632
    %693 = vmatprep.subr.mxu0 0.0
    %694 = vmatpush2.xpose.msra.mxu0 %v629
    %695 = vmatprep.subr.mxu0 0.0
    %696 = vmatpush2.xpose.msra.mxu0 %v626
    %697 = vmatprep.subr.mxu0 0.0
    %698 = vmatpush2.xpose.msra.mxu0 %v623
    %699 = vmatprep.subr.mxu0 0.0
    %700 = vmatpush2.xpose.msra.mxu0 %v620
    %701 = vmatprep.subr.mxu0 0.0
    %702 = vmatpush2.xpose.msra.mxu0 %v617
    %703 = vmatprep.subr.mxu0 0.0
    %704 = vmatpush2.xpose.msra.mxu0 %v614
    %705 = vmatprep.subr.mxu0 0.0
    %706 = vmatpush2.xpose.msra.mxu0 %v611
    %707 = vmatprep.subr.mxu0 0.0
    %708 = vmatpush2.xpose.msra.mxu0 %v608
    %709 = vmatprep.subr.mxu0 0.0
    %710 = vmatpush2.xpose.msra.mxu0 %v605
    %711 = vmatprep.subr.mxu0 0.0
    %712 = vmatpush2.xpose.msra.mxu0 %v602
    %713 = vmatprep.mubr.f32.mxu0 0.0
    %714 = vmatmul.mubr.f32.gmra.mxu0 %v551
    %v715 = vpop.f32.mrf.mxu0
    %v716 = vadd.f32 %v548, %v715
    %v717 = vpop.f32.mrf.mxu0
    %v718 = vadd.f32 %v548, %v717
    %719 = vdwg.mxu0
    %v720 = vxor.u32 %v716, 2147483648
    %v721 = vxor.u32 %v718, 2147483648
    %v722 = vmul.f32 %v720, 1.442695
    %v723 = vpow.pop %v722
    %v724 = vmul.f32 %v721, 1.442695
    %v725 = vpow.pop %v724
    %v726 = vadd.f32 %v723, 1.0
    %v727 = vadd.f32 %v725, 1.0
    %v728 = vrcp.pop %v726
    %v729 = vmul.f32 1.0, %v728
    %v730 = vrcp.pop %v727
    %v731 = vmul.f32 1.0, %v730
    %v732 = vld [vmem:[%s2] sm:$0x1]
    %733 = vst [vmem:[#allocation5] sm:$0x1] %v729
    %734 = vst [vmem:[#allocation7] sm:$0x1] %v731
    %v735 = vmul.f32 %v729, %v732
    %v736 = vsub.f32 1.0, %v732
    %v737 = vmul.f32 %v731, %v736
    %v738 = vadd.f32 %v735, %v737
    %739 = vst [vmem:[#allocation3] sm:$0x1] %v738
    // Predicated region
    $region34: #{tpu_custom_call.1} parent=1 // pred_check
      _
    $region35: #{tpu_custom_call.1} parent=1 // pred_check_branch
      %741 = sbr.rel (0) target = $region37
    $region36: #{tpu_custom_call.1} parent=1 // pred_region
      %s743 = ssub.s32 16, 16
      %744 = vsyncadd [#allocation4], %s743
      %s746 = sshll.u32 [#allocation3], 4
      %s747 = int_to_ptr.vmem [resolvable:$true] %s746
      %749 = dma.vmem_to_hbm [thread:$0]  %s747, 16, %s8, [#allocation4]
    $region37: #{tpu_custom_call.1} parent=1 // pred_fallthru
      _
    // Predicated region
    $region38: #{tpu_custom_call.1} parent=1 // pred_check
      _
    $region39: #{tpu_custom_call.1} parent=1 // pred_check_branch
      %751 = sbr.rel (0) target = $region41
    $region40: #{tpu_custom_call.1} parent=1 // pred_region
      %s753 = ssub.s32 16, 16
      %754 = vsyncadd [#allocation6], %s753
      %s756 = sshll.u32 [#allocation5], 4
      %s757 = int_to_ptr.vmem [resolvable:$true] %s756
      %759 = dma.vmem_to_hbm [thread:$0]  %s757, 16, %s9, [#allocation6]
    $region41: #{tpu_custom_call.1} parent=1 // pred_fallthru
      _
    // Predicated region
    $region42: #{tpu_custom_call.1} parent=1 // pred_check
      _
    $region43: #{tpu_custom_call.1} parent=1 // pred_check_branch
      %761 = sbr.rel (0) target = $region45
    $region44: #{tpu_custom_call.1} parent=1 // pred_region
      %s763 = ssub.s32 16, 16
      %764 = vsyncadd [#allocation6], %s763
      %s766 = sshll.u32 [#allocation7], 4
      %s767 = int_to_ptr.vmem [resolvable:$true] %s766
      %769 = dma.vmem_to_hbm [thread:$0]  %s767, 16, %s10, [#allocation6]
    $region45: #{tpu_custom_call.1} parent=1 // pred_fallthru
      _
    // Predicated region
    $region46: #{tpu_custom_call.1} parent=1 // pred_check
      _
    $region47: #{tpu_custom_call.1} parent=1 // pred_check_branch
      %771 = sbr.rel (0) target = $region49
    $region48: #{tpu_custom_call.1} parent=1 // pred_region
      %772 = dma.done [#allocation4], 16
    $region49: #{tpu_custom_call.1} parent=1 // pred_fallthru
      _
    // Predicated region
    $region50: #{tpu_custom_call.1} parent=1 // pred_check
      _
    $region51: #{tpu_custom_call.1} parent=1 // pred_check_branch
      %774 = sbr.rel (0) target = $region53
    $region52: #{tpu_custom_call.1} parent=1 // pred_region
      %775 = dma.done [#allocation6], 16
    $region53: #{tpu_custom_call.1} parent=1 // pred_fallthru
      _
    // Predicated region
    $region54: #{tpu_custom_call.1} parent=1 // pred_check
      _
    $region55: #{tpu_custom_call.1} parent=1 // pred_check_branch
      %777 = sbr.rel (0) target = $region57
    $region56: #{tpu_custom_call.1} parent=1 // pred_region
      %778 = dma.done [#allocation6], 16
    $region57: #{tpu_custom_call.1} parent=1 // pred_fallthru
      _
    %779 = vsyncpa [#allocation4], 1
    %780 = vsyncpa [#allocation6], 1

</llo_original>
